<compile_context>
chip_gen: v5e
topology: v5e:2x2
jax: 0.10.0
libtpu: 0.0.40
codegen_flags: <defaults>
</compile_context>

<pallas_src>
import math
import functools

import jax
import jax.numpy as jnp
from jax import lax
from jax.experimental import pallas as pl
from jax.experimental.pallas import tpu as pltpu


def _build_pe_table(d_model: int, max_len: int) -> jnp.ndarray:
    """Replicates the PyTorch buffer: shape (max_len, 1, d_model), float32."""
    assert d_model % 2 == 0, "PositionalEncoding requires an even d_model"
    position = jnp.arange(max_len, dtype=jnp.float32)[:, None]            # (L, 1)
    div_term = jnp.exp(
        jnp.arange(0, d_model, 2, dtype=jnp.float32)
        * (-math.log(10000.0) / d_model)
    )                                                                     # (D/2,)
    angles = position * div_term                                          # (L, D/2)
    pe = jnp.stack([jnp.sin(angles), jnp.cos(angles)], axis=-1)           # (L, D/2, 2)
    pe = pe.reshape(max_len, d_model)                                     # even=sin, odd=cos
    return pe[:, None, :]                                                 # (L, 1, D)


def _mix32(x):
    """32-bit integer finalizer (splitmix/murmur style). All uint32, wraps mod 2^32."""
    x = x ^ (x >> 16)
    x = x * jnp.uint32(0x7FEB352D)
    x = x ^ (x >> 15)
    x = x * jnp.uint32(0x846CA68B)
    x = x ^ (x >> 16)
    return x


def _pe_dropout_kernel(seed_ref, x_ref, pe_ref, o_ref, *,
                       p, training, batch, tile_b, d_model):
    # x_ref: (tile_b, D); pe_ref: (1, D) -> broadcast-add over the batch rows.
    y = x_ref[...] + pe_ref[...]

    if training and p > 0.0:
        # Counter-based hash PRNG: element id -> uniform uint32 bits.
        # Independent of tiling; vary `seed` per training step for fresh masks.
        s_idx = lax.convert_element_type(pl.program_id(0), jnp.uint32)
        b_blk = lax.convert_element_type(pl.program_id(1), jnp.uint32)
        seed_u = lax.convert_element_type(seed_ref[0], jnp.uint32)

        row = lax.broadcasted_iota(jnp.int32, (tile_b, d_model), 0).astype(jnp.uint32)
        col = lax.broadcasted_iota(jnp.int32, (tile_b, d_model), 1).astype(jnp.uint32)
        gid = (s_idx * jnp.uint32(batch) + b_blk * jnp.uint32(tile_b) + row) \
            * jnp.uint32(d_model) + col
        bits = _mix32(gid * jnp.uint32(2654435761)
                      + seed_u * jnp.uint32(0x9E3779B9)
                      + jnp.uint32(0x85EBCA6B))

        # Integer-domain keep test: P(drop) = threshold / 2^32 ~= p.
        threshold = min(int(round(p * 4294967296.0)), 4294967295)
        keep = bits >= jnp.uint32(threshold)
        y = jnp.where(keep, y * (1.0 / (1.0 - p)), jnp.zeros_like(y))

    o_ref[...] = y.astype(o_ref.dtype)


def positional_encoding_forward(x, pe, *, p=0.1, training=True, seed=0, tile_b=None):
    """x: (S, B, D); pe: (max_len, 1, D). Returns dropout(x + pe[:S]) with shape (S, B, D)."""
    S, B, D = x.shape
    assert pe.shape[0] >= S and pe.shape[2] == D, "pe table too small / wrong width"

    # Keep pe in the activation dtype (bf16 activations -> bf16 pe reads).
    pe_sliced = pe[:S].astype(x.dtype)                                    # (S, 1, D)

    itemsize = jnp.dtype(x.dtype).itemsize
    if tile_b is None:
        # ~2 MiB per block target, <= 512 rows, bounded by B.
        rows_budget = max(8, (2 * 1024 * 1024) // max(D * itemsize, 1))
        tile_b = min(512, rows_budget, B)
    tile_b = min(int(tile_b), B)
    if tile_b < B:
        tile_b = max(8, (tile_b // 8) * 8)        # sublane-aligned (or == B)

    nb = pl.cdiv(B, tile_b)
    seed_arr = jnp.asarray([seed], dtype=jnp.int32)

    kernel = functools.partial(
        _pe_dropout_kernel, p=float(p), training=bool(training),
        batch=B, tile_b=tile_b, d_model=D)

    cost = pl.CostEstimate(
        flops=2 * S * B * D,
        transcendentals=0,
        bytes_accessed=2 * S * B * D * itemsize + S * D * itemsize)

    return pl.pallas_call(
        kernel,
        out_shape=jax.ShapeDtypeStruct((S, B, D), x.dtype),
        grid_spec=pltpu.PrefetchScalarGridSpec(
            num_scalar_prefetch=1,
            grid=(S, nb),
            in_specs=[
                # x: one seq row, one batch tile per step -> kernel sees (tile_b, D)
                pl.BlockSpec((None, tile_b, D), lambda s, j, seed: (s, j, 0)),
                # pe: (1, D) row, re-fetched only when s changes -> kernel sees (1, D)
                pl.BlockSpec((None, 1, D), lambda s, j, seed: (s, 0, 0)),
            ],
            out_specs=pl.BlockSpec((None, tile_b, D), lambda s, j, seed: (s, j, 0)),
        ),
        compiler_params=pltpu.CompilerParams(
            dimension_semantics=("parallel", "parallel"),
            vmem_limit_bytes=32 * 1024 * 1024,
        ),
        cost_estimate=cost,
    )(seed_arr, x, pe_sliced)


if __name__ == "__main__":
    # Small shapes consistent with the module: seq=8, batch=2, d_model=32, max_len=16.
    d_model, max_len, dropout_p = 32, 16, 0.1
    S, B = 8, 2

    key = jax.random.PRNGKey(0)
    x = jax.random.normal(key, (S, B, d_model), dtype=jnp.float32)
    pe = _build_pe_table(d_model, max_len)
    ref = x + pe[:S]                                                      # broadcast add

    # Eval mode (dropout disabled): must equal the plain broadcast add.
    out_eval = positional_encoding_forward(x, pe, p=dropout_p, training=False)
    jax.block_until_ready(out_eval)
    assert out_eval.shape == (S, B, d_model)
    assert jnp.allclose(out_eval, ref, atol=1e-6, rtol=1e-6)

    # Training mode (inverted dropout): kept elements are ref/(1-p), dropped are 0.
    out_train = positional_encoding_forward(x, pe, p=dropout_p, training=True, seed=0)
    jax.block_until_ready(out_train)
    assert out_train.shape == (S, B, d_model)
    kept = out_train != 0
    assert jnp.allclose(jnp.where(kept, out_train * (1.0 - dropout_p), 0.0),
                        jnp.where(kept, ref, 0.0), atol=1e-5, rtol=1e-5)

    print("KERNEL_OK")
</pallas_src>

<mosaic_0001>
module attributes {stable_mosaic.version = 11 : i64} {
  func.func @_pe_dropout_kernel(%arg0: i32, %arg1: i32, %arg2: memref<1xi32, #tpu.memory_space<smem>>, %arg3: memref<1x2x32xf32, #tpu.memory_space<vmem>>, %arg4: memref<1x1x32xf32, #tpu.memory_space<vmem>>, %arg5: memref<1x2x32xf32, #tpu.memory_space<vmem>>) attributes {dimension_semantics = [#tpu.dimension_semantics<parallel>, #tpu.dimension_semantics<parallel>], iteration_bounds = array<i64: 8, 1>, scalar_prefetch = 1 : i64, scratch_operands = 0 : i64, tpu.core_type = #tpu.core_type<tc>, window_params = [{transform_indices = @transform_0, window_bounds = array<i64: 1, 2, 32>}, {transform_indices = @transform_1, window_bounds = array<i64: 1, 1, 32>}, {transform_indices = @transform_2, window_bounds = array<i64: 1, 2, 32>}]} {
    %c0 = arith.constant 0 : index
    %c0_0 = arith.constant 0 : index
    %c0_1 = arith.constant 0 : index
    %0 = vector.load %arg3[%c0, %c0_0, %c0_1] : memref<1x2x32xf32, #tpu.memory_space<vmem>>, vector<1x2x32xf32>
    %1 = vector.shape_cast %0 : vector<1x2x32xf32> to vector<2x32xf32>
    %c0_2 = arith.constant 0 : index
    %c0_3 = arith.constant 0 : index
    %c0_4 = arith.constant 0 : index
    %2 = vector.load %arg4[%c0_2, %c0_3, %c0_4] : memref<1x1x32xf32, #tpu.memory_space<vmem>>, vector<1x1x32xf32>
    %3 = vector.shape_cast %2 : vector<1x1x32xf32> to vector<1x32xf32>
    %4 = vector.broadcast %3 : vector<1x32xf32> to vector<2x32xf32>
    %5 = arith.addf %1, %4 : vector<2x32xf32>
    %c0_5 = arith.constant 0 : index
    %c0_6 = arith.constant 0 : index
    %c0_7 = arith.constant 0 : index
    %6 = vector.load %arg5[%c0_5, %c0_6, %c0_7] : memref<1x2x32xf32, #tpu.memory_space<vmem>>, vector<1x2x32xf32>
    %7 = vector.shape_cast %6 : vector<1x2x32xf32> to vector<2x32xf32>
    %8 = vector.shape_cast %5 : vector<2x32xf32> to vector<1x2x32xf32>
    tpu.vector_store %arg5[%c0_5, %c0_6, %c0_7], %8 {strides = array<i32>} : memref<1x2x32xf32, #tpu.memory_space<vmem>>, vector<1x2x32xf32>,
    return
  }
  func.func @transform_0(%arg0: i32, %arg1: i32, %arg2: memref<1xi32, #tpu.memory_space<smem>>) -> (i32, i32, i32) {
    %c0_i32 = arith.constant 0 : i32
    %c0_i32_0 = arith.constant 0 : i32
    return %arg0, %arg1, %c0_i32 : i32, i32, i32
  }
  func.func @transform_1(%arg0: i32, %arg1: i32, %arg2: memref<1xi32, #tpu.memory_space<smem>>) -> (i32, i32, i32) {
    %c0_i32 = arith.constant 0 : i32
    %c0_i32_0 = arith.constant 0 : i32
    %c0_i32_1 = arith.constant 0 : i32
    return %arg0, %c0_i32, %c0_i32_0 : i32, i32, i32
  }
  func.func @transform_2(%arg0: i32, %arg1: i32, %arg2: memref<1xi32, #tpu.memory_space<smem>>) -> (i32, i32, i32) {
    %c0_i32 = arith.constant 0 : i32
    %c0_i32_0 = arith.constant 0 : i32
    return %arg0, %arg1, %c0_i32 : i32, i32, i32
  }
}

</mosaic_0001>

<llo_original>
// kernel: tpu_custom_call.1
$region0: #{tpu_custom_call.1}
  #allocation0 [shape = 'u32[]', space=smem, size = 0x4, offset = 0x4, fixed_abs, tag = 'smem constant byte address 0x4 - core index']
  #allocation1 [shape = 'u32[72,128]{1,0:T(1,128)}', space=vmem, size = 0x9000, scoped, tag = 'internal scratch']
  #allocation2 [shape = 's32[1]{0}', space=sflag, size = 0x4, scoped, tag = 'scoped memory for tpu_custom_call.1']
  #allocation3 [shape = 's32[1]{0:T(128)S(6)}', space=smem, size = 0x200, scoped, tag = 'prefetched SMEM operand 0']
  %s0 = inlined_call_operand.<no memory space> [shape: s32[1], index: 0, kind: input, shape index: {}]
  %s1 = inlined_call_operand.hbm [shape: f32[8,2,32], index: 1, kind: input, shape index: {}]
  %s2 = inlined_call_operand.hbm [shape: f32[8,1,32], index: 2, kind: input, shape index: {}]
  %s3 = inlined_call_operand.hbm [shape: f32[8,2,32], index: 3, kind: output, shape index: {}]
  %s4 = sld [smem:[#allocation0]]
  $region49: #{tpu_custom_call.1} parent=0
    _
  %s6 = ssub.s32 1, %s4
  %s7 = scalar_select 0, %s6, %s4
  %8 = sst [smem:[#allocation3]] %s0
  $region1: #{tpu_custom_call.1} parent=0
    #allocation4 [shape = 'u8[2048]{0}', space=vmem, size = 0x800, scoped, tag = 'input window, operand 1']
    #allocation5 [shape = 's32[2]{0}', space=sflag, size = 0x8, scoped, tag = 'scoped memory for tpu_custom_call.1']
    #allocation6 [shape = 's32[2]{0}', space=sflag, size = 0x8, scoped, tag = 'scoped memory for tpu_custom_call.1']
    #allocation7 [shape = 'u8[1024]{0}', space=vmem, size = 0x400, scoped, tag = 'input window, operand 2']
    #allocation8 [shape = 's32[2]{0}', space=sflag, size = 0x8, scoped, tag = 'scoped memory for tpu_custom_call.1']
    #allocation9 [shape = 'u8[2048]{0}', space=vmem, size = 0x800, scoped, tag = 'output window, operand 0']
    %9 = vsyncpa [#allocation5], 0
    %s10 = scalar_lea.sflag [#allocation5], 1
    %11 = vsyncpa %s10, 0
    %12 = vsyncpa [#allocation8], 0
    %s13 = scalar_lea.sflag [#allocation8], 1
    %14 = vsyncpa %s13, 0
    %15 = vsyncpa [#allocation6], 0
    %s16 = scalar_lea.sflag [#allocation6], 1
    %17 = vsyncpa %s16, 0
    loop: start=0, step=1, limit=10
    $region2: #{tpu_custom_call.1} parent=1 // loop_pre_header
      _
    $region3: #{tpu_custom_call.1} parent=1 // loop_header
      %s19 = sphi 0, %s23
      %p20 = scmp.ge.s32.totalorder %s19, 10
      %s26 = sphi 0, %s38
      %s27 = sphi 0, %s34
      %s28 = sphi 0, %s26
      %s29 = sphi 0, %s27
      %s30 = sphi 0, %s28
      %s31 = sphi 0, %s29
      %s43 = sphi 0, %s45
      %s46 = sphi 0, %s43
      %s47 = sphi 0, %s46
      %s63 = sphi 0, %s47
      %s69 = sphi 0, %s71
      %s72 = sphi 0, %s69
      %s73 = sphi 0, %s72
      %s89 = sphi 0, %s73
      %s97 = sphi 0, %s99
      %s100 = sphi 0, %s97
      %s101 = sphi 0, %s100
      %s117 = sphi 0, %s101
    $region4: #{tpu_custom_call.1} parent=1 // loop_header_branch
      %22 = sbr.rel (%p20) target = $region8
    $region5: #{tpu_custom_call.1} parent=1 // loop_body
      %s24 = ssub.s32 %s19, 1
      %s25 = ssub.s32 %s19, 2
      %s32 = sadd.s32 1, %s27
      %p33 = scmp.ge.s32.totalorder %s32, 1
      %s34 = scalar_select %p33, 0, %s32
      %s35 = sadd.s32 1, %s26
      %s36 = scalar_select %p33, %s35, %s26
      %p37 = scmp.ge.s32.totalorder %s36, 8
      %s38 = scalar_select %p37, 0, %s36
      %s39 = ssub.s32 %s26, %s38
      %s40 = ssub.s32 %s27, %s34
      %s41 = sor.u32 %s39, %s40
      %p42 = scmp.eq.s32.totalorder %s41, 0
      %s44 = sadd.s32 %s43, 1
      %s45 = scalar_select %p42, %s43, %s44
      %p48 = pneg %p42
      %p49 = scmp.eq.s32.totalorder %s19, 7
      %p50 = por %p48, %p49
      %p51 = scmp.ne.s32.totalorder %s43, %s46
      %p52 = scmp.eq.s32.totalorder %s19, 0
      %p53 = por %p51, %p52
      %p54 = scmp.ne.s32.totalorder %s43, %s46
      %p55 = scmp.eq.s32.totalorder %s24, 7
      %p56 = por %p54, %p55
      %p57 = scmp.ne.s32.totalorder %s46, %s47
      %p58 = scmp.eq.s32.totalorder %s24, 0
      %p59 = por %p57, %p58
      %p60 = scmp.ne.s32.totalorder %s46, %s47
      %p61 = scmp.eq.s32.totalorder %s25, 7
      %p62 = por %p60, %p61
      %p64 = scmp.ne.s32.totalorder %s47, %s63
      %p65 = scmp.eq.s32.totalorder %s25, 0
      %p66 = por %p64, %p65
      %s67 = ssub.s32 %s26, %s38
      %p68 = scmp.eq.s32.totalorder %s67, 0
      %s70 = sadd.s32 %s69, 1
      %s71 = scalar_select %p68, %s69, %s70
      %p74 = pneg %p68
      %p75 = scmp.eq.s32.totalorder %s19, 7
      %p76 = por %p74, %p75
      %p77 = scmp.ne.s32.totalorder %s69, %s72
      %p78 = scmp.eq.s32.totalorder %s19, 0
      %p79 = por %p77, %p78
      %p80 = scmp.ne.s32.totalorder %s69, %s72
      %p81 = scmp.eq.s32.totalorder %s24, 7
      %p82 = por %p80, %p81
      %p83 = scmp.ne.s32.totalorder %s72, %s73
      %p84 = scmp.eq.s32.totalorder %s24, 0
      %p85 = por %p83, %p84
      %p86 = scmp.ne.s32.totalorder %s72, %s73
      %p87 = scmp.eq.s32.totalorder %s25, 7
      %p88 = por %p86, %p87
      %p90 = scmp.ne.s32.totalorder %s73, %s89
      %p91 = scmp.eq.s32.totalorder %s25, 0
      %p92 = por %p90, %p91
      %s93 = ssub.s32 %s26, %s38
      %s94 = ssub.s32 %s27, %s34
      %s95 = sor.u32 %s93, %s94
      %p96 = scmp.eq.s32.totalorder %s95, 0
      %s98 = sadd.s32 %s97, 1
      %s99 = scalar_select %p96, %s97, %s98
      %p102 = pneg %p96
      %p103 = scmp.eq.s32.totalorder %s19, 7
      %p104 = por %p102, %p103
      %p105 = scmp.ne.s32.totalorder %s97, %s100
      %p106 = scmp.eq.s32.totalorder %s19, 0
      %p107 = por %p105, %p106
      %p108 = scmp.ne.s32.totalorder %s97, %s100
      %p109 = scmp.eq.s32.totalorder %s24, 7
      %p110 = por %p108, %p109
      %p111 = scmp.ne.s32.totalorder %s100, %s101
      %p112 = scmp.eq.s32.totalorder %s24, 0
      %p113 = por %p111, %p112
      %p114 = scmp.ne.s32.totalorder %s100, %s101
      %p115 = scmp.eq.s32.totalorder %s25, 7
      %p116 = por %p114, %p115
      %p118 = scmp.ne.s32.totalorder %s101, %s117
      %p119 = scmp.eq.s32.totalorder %s25, 0
      %p120 = por %p118, %p119
      %p121 = scmp.le.s32.totalorder 1, %s19
      %p122 = scmp.lt.s32.totalorder %s19, 9
      %p123 = pnand %p121, %p122
      %p124 = pneg %p123
      // Predicated region
      $region9: #{tpu_custom_call.1} parent=5 // pred_check
        _
      $region10: #{tpu_custom_call.1} parent=5 // pred_check_branch
        %126 = sbr.rel (%p123) target = $region12
      $region11: #{tpu_custom_call.1} parent=5 // pred_region
        %s127 = ssub.s32 %s19, 1
      $region12: #{tpu_custom_call.1} parent=5 // pred_fallthru
        _
      %p128 = scmp.lt.s32.totalorder %s19, 8
      // Predicated region
      $region13: #{tpu_custom_call.1} parent=5 // pred_check
        %p129 = pneg %p128
      $region14: #{tpu_custom_call.1} parent=5 // pred_check_branch
        %131 = sbr.rel (%p129) target = $region16
      $region15: #{tpu_custom_call.1} parent=5 // pred_region
        // Predicated region
        $region17: #{tpu_custom_call.1} parent=15 // pred_check
          %p132 = pneg %p53
        $region18: #{tpu_custom_call.1} parent=15 // pred_check_branch
          %134 = sbr.rel (%p132) target = $region20
        $region19: #{tpu_custom_call.1} parent=15 // pred_region
          %s135 = sand.u32 %s43, 1
          %s136 = scalar_lea.sflag [#allocation5], %s135
          %s137 = sand.u32 %s43, 1
          %s138 = smul.addr %s137, 2
          %s139 = scalar_lea.vmem [#allocation4], %s138
          %141 = vsyncadd %s136, 0
          %s142 = sadd.s32 %s27, %s26
          %s143 = smul.addr %s142, 2
          %s144 = scalar_lea.hbm %s1, %s143
          %s146 = sshll.u32 %s144, 4
          %s147 = int_to_ptr.hbm [resolvable:$true] %s146
          %s148 = sshll.u32 %s139, 4
          %s149 = int_to_ptr.vmem [resolvable:$true] %s148
          %151 = dma.hbm_to_vmem [thread:$0]  %s147, 32, %s149, %s136
        $region20: #{tpu_custom_call.1} parent=15 // pred_fallthru
          _
        // Predicated region
        $region21: #{tpu_custom_call.1} parent=15 // pred_check
          %p152 = pneg %p79
        $region22: #{tpu_custom_call.1} parent=15 // pred_check_branch
          %154 = sbr.rel (%p152) target = $region24
        $region23: #{tpu_custom_call.1} parent=15 // pred_region
          %s155 = sand.u32 %s69, 1
          %s156 = scalar_lea.sflag [#allocation8], %s155
          %s157 = sand.u32 %s69, 1
          %s158 = scalar_lea.vmem [#allocation7], %s157
          %160 = vsyncadd %s156, 0
          %s161 = scalar_lea.hbm %s2, %s26
          %s163 = sshll.u32 %s161, 4
          %s164 = int_to_ptr.hbm [resolvable:$true] %s163
          %s165 = sshll.u32 %s158, 4
          %s166 = int_to_ptr.vmem [resolvable:$true] %s165
          %168 = dma.hbm_to_vmem [thread:$0]  %s164, 16, %s166, %s156
        $region24: #{tpu_custom_call.1} parent=15 // pred_fallthru
          _
      $region16: #{tpu_custom_call.1} parent=5 // pred_fallthru
        _
      %p169 = scmp.le.s32.totalorder 1, %s19
      %p170 = scmp.lt.s32.totalorder %s19, 9
      %p171 = pnand %p169, %p170
      %p172 = pneg %p171
      // Predicated region
      $region25: #{tpu_custom_call.1} parent=5 // pred_check
        _
      $region26: #{tpu_custom_call.1} parent=5 // pred_check_branch
        %174 = sbr.rel (%p171) target = $region28
      $region27: #{tpu_custom_call.1} parent=5 // pred_region
        %s175 = ssub.s32 %s19, 1
        %s176 = sand.u32 %s46, 1
        %s177 = scalar_lea.sflag [#allocation5], %s176
        %s178 = sand.u32 %s46, 1
        %s179 = smul.addr %s178, 2
        %s180 = scalar_lea.vmem [#allocation4], %s179
        // Predicated region
        $region29: #{tpu_custom_call.1} parent=27 // pred_check
          %p181 = pneg %p59
        $region30: #{tpu_custom_call.1} parent=27 // pred_check_branch
          %183 = sbr.rel (%p181) target = $region32
        $region31: #{tpu_custom_call.1} parent=27 // pred_region
          %185 = dma.done %s177, 32
        $region32: #{tpu_custom_call.1} parent=27 // pred_fallthru
          _
        %s186 = sand.u32 %s72, 1
        %s187 = scalar_lea.sflag [#allocation8], %s186
        %s188 = sand.u32 %s72, 1
        %s189 = scalar_lea.vmem [#allocation7], %s188
        // Predicated region
        $region33: #{tpu_custom_call.1} parent=27 // pred_check
          %p190 = pneg %p85
        $region34: #{tpu_custom_call.1} parent=27 // pred_check_branch
          %192 = sbr.rel (%p190) target = $region36
        $region35: #{tpu_custom_call.1} parent=27 // pred_region
          %194 = dma.done %s187, 16
        $region36: #{tpu_custom_call.1} parent=27 // pred_fallthru
          _
        %s195 = sand.u32 %s46, 1
        %s196 = scalar_lea.sflag [#allocation5], %s195
        %s197 = sand.u32 %s46, 1
        %s198 = smul.addr %s197, 2
        %s199 = scalar_lea.vmem [#allocation4], %s198
        %p200 = pneg %p59
        %p201 = pneg %p56
        %s202 = sand.u32 %s72, 1
        %s203 = scalar_lea.sflag [#allocation8], %s202
        %s204 = sand.u32 %s72, 1
        %s205 = scalar_lea.vmem [#allocation7], %s204
        %p206 = pneg %p85
        %p207 = pneg %p82
        %p208 = pneg %p113
        %p209 = pneg %p110
        %s210 = sand.u32 %s100, 1
        %s211 = scalar_lea.sflag [#allocation6], %s210
        %s212 = sand.u32 %s100, 1
        %s213 = smul.addr %s212, 2
        %s214 = scalar_lea.vmem [#allocation9], %s213
        %v215 = vld [vmem:[%s180] sm:$0x3]
        %v216 = vld [vmem:[%s189] sm:$0x1]
        %v218 = vperm.slane %v216, 0
        %v220 = vadd.f32 %v215, %v218
        %vm221 = vcmask 254976
        %222 = vst.msk [vmem:[%s214] sm:$0x3] %vm221, %v220
        %s223 = sand.u32 %s100, 1
        %s224 = scalar_lea.sflag [#allocation6], %s223
        %s225 = sand.u32 %s100, 1
        %s226 = smul.addr %s225, 2
        %s227 = scalar_lea.vmem [#allocation9], %s226
        // Predicated region
        $region37: #{tpu_custom_call.1} parent=27 // pred_check
          %p228 = pneg %p110
        $region38: #{tpu_custom_call.1} parent=27 // pred_check_branch
          %230 = sbr.rel (%p228) target = $region40
        $region39: #{tpu_custom_call.1} parent=27 // pred_region
          %232 = vsyncadd %s224, 0
          %s233 = sadd.s32 %s29, %s28
          %s234 = smul.addr %s233, 2
          %s235 = scalar_lea.hbm %s3, %s234
          %s237 = sshll.u32 %s227, 4
          %s238 = int_to_ptr.vmem [resolvable:$true] %s237
          %s239 = sshll.u32 %s235, 4
          %s240 = int_to_ptr.hbm [resolvable:$true] %s239
          %242 = dma.vmem_to_hbm [thread:$0]  %s238, 32, %s240, %s224
        $region40: #{tpu_custom_call.1} parent=27 // pred_fallthru
          _
      $region28: #{tpu_custom_call.1} parent=5 // pred_fallthru
        _
      %p243 = scmp.le.s32.totalorder 2, %s19
      // Predicated region
      $region41: #{tpu_custom_call.1} parent=5 // pred_check
        %p244 = pneg %p243
      $region42: #{tpu_custom_call.1} parent=5 // pred_check_branch
        %246 = sbr.rel (%p244) target = $region44
      $region43: #{tpu_custom_call.1} parent=5 // pred_region
        %s247 = ssub.s32 %s19, 2
        // Predicated region
        $region45: #{tpu_custom_call.1} parent=43 // pred_check
          %p248 = pneg %p116
        $region46: #{tpu_custom_call.1} parent=43 // pred_check_branch
          %250 = sbr.rel (%p248) target = $region48
        $region47: #{tpu_custom_call.1} parent=43 // pred_region
          %s251 = sand.u32 %s101, 1
          %s252 = scalar_lea.sflag [#allocation6], %s251
          %s253 = sand.u32 %s101, 1
          %s254 = smul.addr %s253, 2
          %s255 = scalar_lea.vmem [#allocation9], %s254
          %257 = dma.done %s252, 32
        $region48: #{tpu_custom_call.1} parent=43 // pred_fallthru
          _
      $region44: #{tpu_custom_call.1} parent=5 // pred_fallthru
        _
    $region6: #{tpu_custom_call.1} parent=1 // loop_footer
      %s23 = sadd.s32 1, %s19
    $region7: #{tpu_custom_call.1} parent=1 // loop_footer_branch
      %18 = sbr.rel target = $region3
    $region8: #{tpu_custom_call.1} parent=1 // loop_exit
      _
    %258 = vsyncpa [#allocation5], 1
    %s259 = scalar_lea.sflag [#allocation5], 1
    %260 = vsyncpa %s259, 1
    %261 = vsyncpa [#allocation8], 1
    %s262 = scalar_lea.sflag [#allocation8], 1
    %263 = vsyncpa %s262, 1
    %264 = vsyncpa [#allocation6], 1
    %s265 = scalar_lea.sflag [#allocation6], 1
    %266 = vsyncpa %s265, 1

</llo_original>
